<compile_context>
chip_gen: v5e
topology: v5e:2x2
jax: 0.10.0
libtpu: 0.0.40
codegen_flags: <defaults>
</compile_context>

<pallas_src>
import functools

import numpy as np
import jax
import jax.numpy as jnp
from jax import lax
from jax.experimental import pallas as pl
from jax.experimental.pallas import tpu as pltpu


def _mixconv_kernel(x_ref, w1_ref, w3_ref, scale_ref, bias_ref, cmask_ref,
                    o_ref, xpad_ref, *, H, W, c0, c1g):
    # x_ref:     (1, C1, S)       one image; channels on sublanes, H*W on lanes
    # w1_ref:    (c0, C1)         1x1 branch weights, (out, in)
    # w3_ref:    (9*c1g, C1)      3x3 branch weights, tap-major, (out, in) per tap
    # scale_ref: (C2, 1) f32      folded BN scale  = gamma / sqrt(var + eps)
    # bias_ref:  (C2, 1) f32      folded BN bias   = beta - mean * scale
    # cmask_ref: (2, S)           row 0: "left neighbour valid", row 1: "right valid"
    # o_ref:     (1, C2, S)
    # xpad_ref:  (C1, S + 2*PAD)  VMEM scratch: zero-padded flattened image
    S = H * W
    PAD = W + 1
    C1 = x_ref.shape[1]

    xs = x_ref[0]                                   # (C1, S) compute dtype
    xf32 = xs.astype(jnp.float32)                   # residual kept in f32

    # Zero-padded flattened image in VMEM (replaces wrapper-side jnp.pad /
    # the old 9x im2col tensor).  Only the two halo strips need zeroing.
    zero_pad = jnp.zeros((C1, PAD), dtype=x_ref.dtype)
    xpad_ref[:, :PAD] = zero_pad
    xpad_ref[:, PAD + S:] = zero_pad
    xpad_ref[:, PAD:PAD + S] = xs

    scale = scale_ref[...]                          # (C2, 1) f32
    bias = bias_ref[...]                            # (C2, 1) f32
    cmask = cmask_ref[...]                          # (2, S)

    # ---- 1x1 branch (center tap only) + BN + LeakyReLU + residual ----
    y1 = jnp.dot(w1_ref[...], xs, preferred_element_type=jnp.float32)   # (c0, S)
    y1 = y1 * scale[:c0] + bias[:c0]
    y1 = jnp.where(y1 >= 0, y1, 0.1 * y1)
    o_ref[0, :c0, :] = (xf32[:c0] + y1).astype(o_ref.dtype)

    # ---- 3x3 branch: 9 shifted taps accumulated in f32 ----
    w3 = w3_ref[...]                                # (9*c1g, C1)
    acc = jnp.zeros((c1g, S), jnp.float32)
    for di in range(3):
        for dj in range(3):
            k = 3 * di + dj
            off = PAD + (di - 1) * W + (dj - 1)
            tap = xpad_ref[:, off:off + S]          # (C1, S), lane-shifted view
            if dj == 0:                             # mask wrap across image rows
                tap = tap * cmask[0:1, :]
            elif dj == 2:
                tap = tap * cmask[1:2, :]
            acc = acc + jnp.dot(w3[k * c1g:(k + 1) * c1g, :], tap,
                                preferred_element_type=jnp.float32)
    y3 = acc * scale[c0:] + bias[c0:]
    y3 = jnp.where(y3 >= 0, y3, 0.1 * y3)
    o_ref[0, c0:, :] = (xf32[c0:] + y3).astype(o_ref.dtype)


def mixconv2d_pallas(x_nchw, w1_hwio, w3_hwio, gamma, beta, run_mean, run_var,
                     eps=1e-5):
    N, C1, H, W = x_nchw.shape
    c0 = w1_hwio.shape[-1]
    c1g = w3_hwio.shape[-1]
    C2 = c0 + c1g
    assert C1 == C2, "residual add requires c1 == c2"
    S = H * W
    PAD = W + 1
    cdtype = x_nchw.dtype    # pass bf16 activations upstream to halve HBM bytes

    # Contiguous (free) reshape: keep NCHW layout, flatten H*W onto the lane axis.
    xf = x_nchw.reshape(N, C1, S)

    # Tiny parameter re-layouts (negligible next to activation traffic).
    w1m = jnp.transpose(w1_hwio[0, 0], (1, 0)).astype(cdtype)            # (c0, C1)
    w3m = jnp.transpose(w3_hwio.reshape(9, C1, c1g), (0, 2, 1))          # (9, c1g, C1)
    w3m = w3m.reshape(9 * c1g, C1).astype(cdtype)

    # TODO(synk): training-mode BatchNorm (per-batch statistics) not implemented;
    # eval-mode running-stats BN is folded into a per-channel scale/bias.
    scale = (gamma / jnp.sqrt(run_var + eps)).astype(jnp.float32)
    bias = (beta - run_mean * scale).astype(jnp.float32)
    scale2 = scale.reshape(C2, 1)
    bias2 = bias.reshape(C2, 1)

    # Column-validity masks for the horizontal +-1 taps: the flattened layout
    # wraps across image rows, so zero the lanes whose source column is outside
    # the image (w==0 for the left taps, w==W-1 for the right taps).
    w_idx = np.arange(S) % W
    cmask_np = np.stack([(w_idx != 0), (w_idx != W - 1)]).astype(np.float32)
    cmask = jnp.asarray(cmask_np, dtype=cdtype)                          # (2, S)

    kernel = functools.partial(_mixconv_kernel, H=H, W=W, c0=c0, c1g=c1g)

    out = pl.pallas_call(
        kernel,
        out_shape=jax.ShapeDtypeStruct((N, C2, S), jnp.float32),
        grid_spec=pltpu.PrefetchScalarGridSpec(
            num_scalar_prefetch=0,
            grid=(N,),                                   # one whole image per step
            in_specs=[
                pl.BlockSpec((1, C1, S), lambda n: (n, 0, 0)),
                pl.BlockSpec((c0, C1), lambda n: (0, 0)),
                pl.BlockSpec((9 * c1g, C1), lambda n: (0, 0)),
                pl.BlockSpec((C2, 1), lambda n: (0, 0)),
                pl.BlockSpec((C2, 1), lambda n: (0, 0)),
                pl.BlockSpec((2, S), lambda n: (0, 0)),
            ],
            out_specs=pl.BlockSpec((1, C2, S), lambda n: (n, 0, 0)),
            scratch_shapes=[pltpu.VMEM((C1, S + 2 * PAD), cdtype)],
        ),
        compiler_params=pltpu.CompilerParams(
            dimension_semantics=("parallel",)),          # batch split across v7x TCs
    )(xf, w1m, w3m, scale2, bias2, cmask)

    return out.reshape(N, C2, H, W)                      # contiguous reshape (free)


def mixconv2d_ref(x_nchw, w1_hwio, w3_hwio, gamma, beta, run_mean, run_var, eps=1e-5):
    # Pure-JAX reference (conv via lax), for correctness checking.
    x_nhwc = jnp.transpose(x_nchw, (0, 2, 3, 1)).astype(jnp.float32)
    dn = ('NHWC', 'HWIO', 'NHWC')
    y1 = lax.conv_general_dilated(x_nhwc, w1_hwio, (1, 1), 'SAME', dimension_numbers=dn)
    y3 = lax.conv_general_dilated(x_nhwc, w3_hwio, (1, 1), 'SAME', dimension_numbers=dn)
    y = jnp.concatenate([y1, y3], axis=-1)
    scale = gamma / jnp.sqrt(run_var + eps)
    y = y * scale + (beta - run_mean * scale)
    y = jnp.where(y >= 0, y, 0.1 * y)
    out = x_nhwc + y
    return jnp.transpose(out, (0, 3, 1, 2))


if __name__ == "__main__":
    # Shapes consistent with MixConv2d(c1=4, c2=4, k=(1,3)):
    #   equal_ch split of c2=4 over 2 groups -> [2, 2] output channels per branch.
    N, C1, H, W = 2, 4, 16, 16
    C2 = 4
    c0, c1g = 2, 2

    key = jax.random.PRNGKey(0)
    kx, k1, k3 = jax.random.split(key, 3)

    x = jax.random.normal(kx, (N, C1, H, W), jnp.float32)
    # Conv weights in HWIO layout (kh, kw, in, out); bias=False as in the module.
    w1 = 0.1 * jax.random.normal(k1, (1, 1, C1, c0), jnp.float32)
    w3 = 0.1 * jax.random.normal(k3, (3, 3, C1, c1g), jnp.float32)
    # Deterministic BatchNorm parameters / running statistics (eval mode).
    gamma = 1.0 + 0.1 * jnp.arange(C2, dtype=jnp.float32)
    beta = 0.05 * jnp.arange(C2, dtype=jnp.float32)
    run_mean = 0.02 * jnp.arange(C2, dtype=jnp.float32)
    run_var = 1.0 + 0.03 * jnp.arange(C2, dtype=jnp.float32)

    out = mixconv2d_pallas(x, w1, w3, gamma, beta, run_mean, run_var)
    out = jax.block_until_ready(out)

    ref = mixconv2d_ref(x, w1, w3, gamma, beta, run_mean, run_var)
    assert out.shape == (N, C2, H, W)
    err = float(jnp.max(jnp.abs(out - ref)))
    # Tolerance covers TPU matmul/conv precision-mode differences; real tap or
    # BN bugs would show up as O(0.1) errors.
    assert jnp.allclose(out, ref, atol=5e-3, rtol=5e-3), err

    print("KERNEL_OK")
</pallas_src>

<mosaic_0001>
module attributes {stable_mosaic.version = 11 : i64} {
  func.func @_mixconv_kernel(%arg0: i32, %arg1: memref<1x4x256xf32, #tpu.memory_space<vmem>>, %arg2: memref<2x4xf32, #tpu.memory_space<vmem>>, %arg3: memref<18x4xf32, #tpu.memory_space<vmem>>, %arg4: memref<4x1xf32, #tpu.memory_space<vmem>>, %arg5: memref<4x1xf32, #tpu.memory_space<vmem>>, %arg6: memref<2x256xf32, #tpu.memory_space<vmem>>, %arg7: memref<1x4x256xf32, #tpu.memory_space<vmem>>, %arg8: memref<4x290xf32, #tpu.memory_space<vmem>>) attributes {dimension_semantics = [#tpu.dimension_semantics<parallel>], iteration_bounds = array<i64: 2>, scalar_prefetch = 0 : i64, scratch_operands = 1 : i64, tpu.core_type = #tpu.core_type<tc>, window_params = [{transform_indices = @transform_0, window_bounds = array<i64: 1, 4, 256>}, {pipeline_mode = #tpu.pipeline_mode<synchronous>, transform_indices = @transform_1, window_bounds = array<i64: 2, 4>}, {pipeline_mode = #tpu.pipeline_mode<synchronous>, transform_indices = @transform_2, window_bounds = array<i64: 18, 4>}, {pipeline_mode = #tpu.pipeline_mode<synchronous>, transform_indices = @transform_3, window_bounds = array<i64: 4, 1>}, {pipeline_mode = #tpu.pipeline_mode<synchronous>, transform_indices = @transform_4, window_bounds = array<i64: 4, 1>}, {pipeline_mode = #tpu.pipeline_mode<synchronous>, transform_indices = @transform_5, window_bounds = array<i64: 2, 256>}, {transform_indices = @transform_6, window_bounds = array<i64: 1, 4, 256>}]} {
    %c0 = arith.constant 0 : index
    %c0_0 = arith.constant 0 : index
    %c0_1 = arith.constant 0 : index
    %0 = vector.load %arg1[%c0, %c0_0, %c0_1] : memref<1x4x256xf32, #tpu.memory_space<vmem>>, vector<1x4x256xf32>
    %1 = vector.shape_cast %0 : vector<1x4x256xf32> to vector<4x256xf32>
    %cst = arith.constant 0.000000e+00 : f32
    %2 = vector.broadcast %cst : f32 to vector<4x17xf32>
    %c0_2 = arith.constant 0 : index
    %c0_3 = arith.constant 0 : index
    %3 = vector.load %arg8[%c0_2, %c0_3] : memref<4x290xf32, #tpu.memory_space<vmem>>, vector<4x17xf32>
    tpu.vector_store %arg8[%c0_2, %c0_3], %2 {strides = array<i32>} : memref<4x290xf32, #tpu.memory_space<vmem>>, vector<4x17xf32>,
    %c0_4 = arith.constant 0 : index
    %c273 = arith.constant 273 : index
    %4 = vector.load %arg8[%c0_4, %c273] : memref<4x290xf32, #tpu.memory_space<vmem>>, vector<4x17xf32>
    tpu.vector_store %arg8[%c0_4, %c273], %2 {strides = array<i32>} : memref<4x290xf32, #tpu.memory_space<vmem>>, vector<4x17xf32>,
    %c0_5 = arith.constant 0 : index
    %c17 = arith.constant 17 : index
    %5 = vector.load %arg8[%c0_5, %c17] : memref<4x290xf32, #tpu.memory_space<vmem>>, vector<4x256xf32>
    tpu.vector_store %arg8[%c0_5, %c17], %1 {strides = array<i32>} : memref<4x290xf32, #tpu.memory_space<vmem>>, vector<4x256xf32>,
    %c0_6 = arith.constant 0 : index
    %c0_7 = arith.constant 0 : index
    %6 = vector.load %arg4[%c0_6, %c0_7] : memref<4x1xf32, #tpu.memory_space<vmem>>, vector<4x1xf32>
    %c0_8 = arith.constant 0 : index
    %c0_9 = arith.constant 0 : index
    %7 = vector.load %arg5[%c0_8, %c0_9] : memref<4x1xf32, #tpu.memory_space<vmem>>, vector<4x1xf32>
    %c0_10 = arith.constant 0 : index
    %c0_11 = arith.constant 0 : index
    %8 = vector.load %arg6[%c0_10, %c0_11] : memref<2x256xf32, #tpu.memory_space<vmem>>, vector<2x256xf32>
    %c0_12 = arith.constant 0 : index
    %c0_13 = arith.constant 0 : index
    %9 = vector.load %arg2[%c0_12, %c0_13] : memref<2x4xf32, #tpu.memory_space<vmem>>, vector<2x4xf32>
    %cst_14 = arith.constant dense<0.000000e+00> : vector<2x256xf32>
    %10 = tpu.matmul %9, %1, %cst_14 {dimension_numbers = #tpu.dot_dimension_numbers<[1], [0], [0], [1], [0, 0, 1, 1], [], []>} : vector<2x4xf32>, vector<4x256xf32>, vector<2x256xf32> -> vector<2x256xf32>
    %11 = vector.extract_strided_slice %6 {offsets = [0, 0], sizes = [2, 1], strides = [1, 1]} : vector<4x1xf32> to vector<2x1xf32>
    %12 = vector.broadcast %11 : vector<2x1xf32> to vector<2x256xf32>
    %13 = arith.mulf %10, %12 : vector<2x256xf32>
    %14 = vector.extract_strided_slice %7 {offsets = [0, 0], sizes = [2, 1], strides = [1, 1]} : vector<4x1xf32> to vector<2x1xf32>
    %15 = vector.broadcast %14 : vector<2x1xf32> to vector<2x256xf32>
    %16 = arith.addf %13, %15 : vector<2x256xf32>
    %cst_15 = arith.constant 0.000000e+00 : f32
    %17 = vector.broadcast %cst_15 : f32 to vector<2x256xf32>
    %18 = arith.cmpf oge, %16, %17 : vector<2x256xf32>
    %cst_16 = arith.constant 1.000000e-01 : f32
    %19 = vector.broadcast %cst_16 : f32 to vector<2x256xf32>
    %20 = arith.mulf %19, %16 : vector<2x256xf32>
    %21 = arith.select %18, %16, %20 : vector<2x256xi1>, vector<2x256xf32>
    %22 = vector.extract_strided_slice %1 {offsets = [0, 0], sizes = [2, 256], strides = [1, 1]} : vector<4x256xf32> to vector<2x256xf32>
    %23 = arith.addf %22, %21 : vector<2x256xf32>
    %c0_17 = arith.constant 0 : index
    %c0_18 = arith.constant 0 : index
    %c0_19 = arith.constant 0 : index
    %24 = vector.load %arg7[%c0_17, %c0_18, %c0_19] : memref<1x4x256xf32, #tpu.memory_space<vmem>>, vector<1x2x256xf32>
    %25 = vector.shape_cast %24 : vector<1x2x256xf32> to vector<2x256xf32>
    %26 = vector.shape_cast %23 : vector<2x256xf32> to vector<1x2x256xf32>
    tpu.vector_store %arg7[%c0_17, %c0_18, %c0_19], %26 {strides = array<i32>} : memref<1x4x256xf32, #tpu.memory_space<vmem>>, vector<1x2x256xf32>,
    %c0_20 = arith.constant 0 : index
    %c0_21 = arith.constant 0 : index
    %27 = vector.load %arg3[%c0_20, %c0_21] : memref<18x4xf32, #tpu.memory_space<vmem>>, vector<18x4xf32>
    %cst_22 = arith.constant 0.000000e+00 : f32
    %28 = vector.broadcast %cst_22 : f32 to vector<2x256xf32>
    %c0_23 = arith.constant 0 : index
    %c0_24 = arith.constant 0 : index
    %29 = vector.load %arg8[%c0_23, %c0_24] : memref<4x290xf32, #tpu.memory_space<vmem>>, vector<4x256xf32>
    %30 = vector.extract_strided_slice %8 {offsets = [0, 0], sizes = [1, 256], strides = [1, 1]} : vector<2x256xf32> to vector<1x256xf32>
    %31 = vector.broadcast %30 : vector<1x256xf32> to vector<4x256xf32>
    %32 = arith.mulf %29, %31 : vector<4x256xf32>
    %33 = vector.extract_strided_slice %27 {offsets = [0, 0], sizes = [2, 4], strides = [1, 1]} : vector<18x4xf32> to vector<2x4xf32>
    %cst_25 = arith.constant dense<0.000000e+00> : vector<2x256xf32>
    %34 = tpu.matmul %33, %32, %cst_25 {dimension_numbers = #tpu.dot_dimension_numbers<[1], [0], [0], [1], [0, 0, 1, 1], [], []>} : vector<2x4xf32>, vector<4x256xf32>, vector<2x256xf32> -> vector<2x256xf32>
    %35 = arith.addf %28, %34 : vector<2x256xf32>
    %c0_26 = arith.constant 0 : index
    %c1 = arith.constant 1 : index
    %36 = vector.load %arg8[%c0_26, %c1] : memref<4x290xf32, #tpu.memory_space<vmem>>, vector<4x256xf32>
    %37 = vector.extract_strided_slice %27 {offsets = [2, 0], sizes = [2, 4], strides = [1, 1]} : vector<18x4xf32> to vector<2x4xf32>
    %cst_27 = arith.constant dense<0.000000e+00> : vector<2x256xf32>
    %38 = tpu.matmul %37, %36, %cst_27 {dimension_numbers = #tpu.dot_dimension_numbers<[1], [0], [0], [1], [0, 0, 1, 1], [], []>} : vector<2x4xf32>, vector<4x256xf32>, vector<2x256xf32> -> vector<2x256xf32>
    %39 = arith.addf %35, %38 : vector<2x256xf32>
    %c0_28 = arith.constant 0 : index
    %c2 = arith.constant 2 : index
    %40 = vector.load %arg8[%c0_28, %c2] : memref<4x290xf32, #tpu.memory_space<vmem>>, vector<4x256xf32>
    %41 = vector.extract_strided_slice %8 {offsets = [1, 0], sizes = [1, 256], strides = [1, 1]} : vector<2x256xf32> to vector<1x256xf32>
    %42 = vector.broadcast %41 : vector<1x256xf32> to vector<4x256xf32>
    %43 = arith.mulf %40, %42 : vector<4x256xf32>
    %44 = vector.extract_strided_slice %27 {offsets = [4, 0], sizes = [2, 4], strides = [1, 1]} : vector<18x4xf32> to vector<2x4xf32>
    %cst_29 = arith.constant dense<0.000000e+00> : vector<2x256xf32>
    %45 = tpu.matmul %44, %43, %cst_29 {dimension_numbers = #tpu.dot_dimension_numbers<[1], [0], [0], [1], [0, 0, 1, 1], [], []>} : vector<2x4xf32>, vector<4x256xf32>, vector<2x256xf32> -> vector<2x256xf32>
    %46 = arith.addf %39, %45 : vector<2x256xf32>
    %c0_30 = arith.constant 0 : index
    %c16 = arith.constant 16 : index
    %47 = vector.load %arg8[%c0_30, %c16] : memref<4x290xf32, #tpu.memory_space<vmem>>, vector<4x256xf32>
    %48 = vector.extract_strided_slice %8 {offsets = [0, 0], sizes = [1, 256], strides = [1, 1]} : vector<2x256xf32> to vector<1x256xf32>
    %49 = vector.broadcast %48 : vector<1x256xf32> to vector<4x256xf32>
    %50 = arith.mulf %47, %49 : vector<4x256xf32>
    %51 = vector.extract_strided_slice %27 {offsets = [6, 0], sizes = [2, 4], strides = [1, 1]} : vector<18x4xf32> to vector<2x4xf32>
    %cst_31 = arith.constant dense<0.000000e+00> : vector<2x256xf32>
    %52 = tpu.matmul %51, %50, %cst_31 {dimension_numbers = #tpu.dot_dimension_numbers<[1], [0], [0], [1], [0, 0, 1, 1], [], []>} : vector<2x4xf32>, vector<4x256xf32>, vector<2x256xf32> -> vector<2x256xf32>
    %53 = arith.addf %46, %52 : vector<2x256xf32>
    %c0_32 = arith.constant 0 : index
    %c17_33 = arith.constant 17 : index
    %54 = vector.load %arg8[%c0_32, %c17_33] : memref<4x290xf32, #tpu.memory_space<vmem>>, vector<4x256xf32>
    %55 = vector.extract_strided_slice %27 {offsets = [8, 0], sizes = [2, 4], strides = [1, 1]} : vector<18x4xf32> to vector<2x4xf32>
    %cst_34 = arith.constant dense<0.000000e+00> : vector<2x256xf32>
    %56 = tpu.matmul %55, %54, %cst_34 {dimension_numbers = #tpu.dot_dimension_numbers<[1], [0], [0], [1], [0, 0, 1, 1], [], []>} : vector<2x4xf32>, vector<4x256xf32>, vector<2x256xf32> -> vector<2x256xf32>
    %57 = arith.addf %53, %56 : vector<2x256xf32>
    %c0_35 = arith.constant 0 : index
    %c18 = arith.constant 18 : index
    %58 = vector.load %arg8[%c0_35, %c18] : memref<4x290xf32, #tpu.memory_space<vmem>>, vector<4x256xf32>
    %59 = vector.extract_strided_slice %8 {offsets = [1, 0], sizes = [1, 256], strides = [1, 1]} : vector<2x256xf32> to vector<1x256xf32>
    %60 = vector.broadcast %59 : vector<1x256xf32> to vector<4x256xf32>
    %61 = arith.mulf %58, %60 : vector<4x256xf32>
    %62 = vector.extract_strided_slice %27 {offsets = [10, 0], sizes = [2, 4], strides = [1, 1]} : vector<18x4xf32> to vector<2x4xf32>
    %cst_36 = arith.constant dense<0.000000e+00> : vector<2x256xf32>
    %63 = tpu.matmul %62, %61, %cst_36 {dimension_numbers = #tpu.dot_dimension_numbers<[1], [0], [0], [1], [0, 0, 1, 1], [], []>} : vector<2x4xf32>, vector<4x256xf32>, vector<2x256xf32> -> vector<2x256xf32>
    %64 = arith.addf %57, %63 : vector<2x256xf32>
    %c0_37 = arith.constant 0 : index
    %c32 = arith.constant 32 : index
    %65 = vector.load %arg8[%c0_37, %c32] : memref<4x290xf32, #tpu.memory_space<vmem>>, vector<4x256xf32>
    %66 = vector.extract_strided_slice %8 {offsets = [0, 0], sizes = [1, 256], strides = [1, 1]} : vector<2x256xf32> to vector<1x256xf32>
    %67 = vector.broadcast %66 : vector<1x256xf32> to vector<4x256xf32>
    %68 = arith.mulf %65, %67 : vector<4x256xf32>
    %69 = vector.extract_strided_slice %27 {offsets = [12, 0], sizes = [2, 4], strides = [1, 1]} : vector<18x4xf32> to vector<2x4xf32>
    %cst_38 = arith.constant dense<0.000000e+00> : vector<2x256xf32>
    %70 = tpu.matmul %69, %68, %cst_38 {dimension_numbers = #tpu.dot_dimension_numbers<[1], [0], [0], [1], [0, 0, 1, 1], [], []>} : vector<2x4xf32>, vector<4x256xf32>, vector<2x256xf32> -> vector<2x256xf32>
    %71 = arith.addf %64, %70 : vector<2x256xf32>
    %c0_39 = arith.constant 0 : index
    %c33 = arith.constant 33 : index
    %72 = vector.load %arg8[%c0_39, %c33] : memref<4x290xf32, #tpu.memory_space<vmem>>, vector<4x256xf32>
    %73 = vector.extract_strided_slice %27 {offsets = [14, 0], sizes = [2, 4], strides = [1, 1]} : vector<18x4xf32> to vector<2x4xf32>
    %cst_40 = arith.constant dense<0.000000e+00> : vector<2x256xf32>
    %74 = tpu.matmul %73, %72, %cst_40 {dimension_numbers = #tpu.dot_dimension_numbers<[1], [0], [0], [1], [0, 0, 1, 1], [], []>} : vector<2x4xf32>, vector<4x256xf32>, vector<2x256xf32> -> vector<2x256xf32>
    %75 = arith.addf %71, %74 : vector<2x256xf32>
    %c0_41 = arith.constant 0 : index
    %c34 = arith.constant 34 : index
    %76 = vector.load %arg8[%c0_41, %c34] : memref<4x290xf32, #tpu.memory_space<vmem>>, vector<4x256xf32>
    %77 = vector.extract_strided_slice %8 {offsets = [1, 0], sizes = [1, 256], strides = [1, 1]} : vector<2x256xf32> to vector<1x256xf32>
    %78 = vector.broadcast %77 : vector<1x256xf32> to vector<4x256xf32>
    %79 = arith.mulf %76, %78 : vector<4x256xf32>
    %80 = vector.extract_strided_slice %27 {offsets = [16, 0], sizes = [2, 4], strides = [1, 1]} : vector<18x4xf32> to vector<2x4xf32>
    %cst_42 = arith.constant dense<0.000000e+00> : vector<2x256xf32>
    %81 = tpu.matmul %80, %79, %cst_42 {dimension_numbers = #tpu.dot_dimension_numbers<[1], [0], [0], [1], [0, 0, 1, 1], [], []>} : vector<2x4xf32>, vector<4x256xf32>, vector<2x256xf32> -> vector<2x256xf32>
    %82 = arith.addf %75, %81 : vector<2x256xf32>
    %83 = vector.extract_strided_slice %6 {offsets = [2, 0], sizes = [2, 1], strides = [1, 1]} : vector<4x1xf32> to vector<2x1xf32>
    %84 = vector.broadcast %83 : vector<2x1xf32> to vector<2x256xf32>
    %85 = arith.mulf %82, %84 : vector<2x256xf32>
    %86 = vector.extract_strided_slice %7 {offsets = [2, 0], sizes = [2, 1], strides = [1, 1]} : vector<4x1xf32> to vector<2x1xf32>
    %87 = vector.broadcast %86 : vector<2x1xf32> to vector<2x256xf32>
    %88 = arith.addf %85, %87 : vector<2x256xf32>
    %cst_43 = arith.constant 0.000000e+00 : f32
    %89 = vector.broadcast %cst_43 : f32 to vector<2x256xf32>
    %90 = arith.cmpf oge, %88, %89 : vector<2x256xf32>
    %cst_44 = arith.constant 1.000000e-01 : f32
    %91 = vector.broadcast %cst_44 : f32 to vector<2x256xf32>
    %92 = arith.mulf %91, %88 : vector<2x256xf32>
    %93 = arith.select %90, %88, %92 : vector<2x256xi1>, vector<2x256xf32>
    %94 = vector.extract_strided_slice %1 {offsets = [2, 0], sizes = [2, 256], strides = [1, 1]} : vector<4x256xf32> to vector<2x256xf32>
    %95 = arith.addf %94, %93 : vector<2x256xf32>
    %c0_45 = arith.constant 0 : index
    %c2_46 = arith.constant 2 : index
    %c0_47 = arith.constant 0 : index
    %96 = vector.load %arg7[%c0_45, %c2_46, %c0_47] : memref<1x4x256xf32, #tpu.memory_space<vmem>>, vector<1x2x256xf32>
    %97 = vector.shape_cast %96 : vector<1x2x256xf32> to vector<2x256xf32>
    %98 = vector.shape_cast %95 : vector<2x256xf32> to vector<1x2x256xf32>
    tpu.vector_store %arg7[%c0_45, %c2_46, %c0_47], %98 {strides = array<i32>} : memref<1x4x256xf32, #tpu.memory_space<vmem>>, vector<1x2x256xf32>,
    return
  }
  func.func @transform_0(%arg0: i32) -> (i32, i32, i32) {
    %c0_i32 = arith.constant 0 : i32
    %c0_i32_0 = arith.constant 0 : i32
    %c0_i32_1 = arith.constant 0 : i32
    return %arg0, %c0_i32, %c0_i32_0 : i32, i32, i32
  }
  func.func @transform_1(%arg0: i32) -> (i32, i32) {
    %c0_i32 = arith.constant 0 : i32
    %c0_i32_0 = arith.constant 0 : i32
    %c0_i32_1 = arith.constant 0 : i32
    return %c0_i32, %c0_i32_0 : i32, i32
  }
  func.func @transform_2(%arg0: i32) -> (i32, i32) {
    %c0_i32 = arith.constant 0 : i32
    %c0_i32_0 = arith.constant 0 : i32
    %c0_i32_1 = arith.constant 0 : i32
    return %c0_i32, %c0_i32_0 : i32, i32
  }
  func.func @transform_3(%arg0: i32) -> (i32, i32) {
    %c0_i32 = arith.constant 0 : i32
    %c0_i32_0 = arith.constant 0 : i32
    %c0_i32_1 = arith.constant 0 : i32
    return %c0_i32, %c0_i32_0 : i32, i32
  }
  func.func @transform_4(%arg0: i32) -> (i32, i32) {
    %c0_i32 = arith.constant 0 : i32
    %c0_i32_0 = arith.constant 0 : i32
    %c0_i32_1 = arith.constant 0 : i32
    return %c0_i32, %c0_i32_0 : i32, i32
  }
  func.func @transform_5(%arg0: i32) -> (i32, i32) {
    %c0_i32 = arith.constant 0 : i32
    %c0_i32_0 = arith.constant 0 : i32
    %c0_i32_1 = arith.constant 0 : i32
    return %c0_i32, %c0_i32_0 : i32, i32
  }
  func.func @transform_6(%arg0: i32) -> (i32, i32, i32) {
    %c0_i32 = arith.constant 0 : i32
    %c0_i32_0 = arith.constant 0 : i32
    %c0_i32_1 = arith.constant 0 : i32
    return %arg0, %c0_i32, %c0_i32_0 : i32, i32, i32
  }
}

</mosaic_0001>

<llo_original>
// kernel: tpu_custom_call.1
$region0: #{tpu_custom_call.1}
  #allocation0 [shape = 'u32[]', space=smem, size = 0x4, offset = 0x4, fixed_abs, tag = 'smem constant byte address 0x4 - core index']
  #allocation1 [shape = 'u32[72,128]{1,0:T(1,128)}', space=vmem, size = 0x9000, scoped, tag = 'internal scratch']
  #allocation2 [shape = 'f32[4,290]{1,0:T(4,128)}', space=vmem, size = 0x1800, scoped, tag = 'scratch operand']
  %s0 = inlined_call_operand.vmem [shape: f32[2,4,256], index: 0, kind: input, shape index: {}]
  %s1 = inlined_call_operand.vmem [shape: f32[2,4], index: 1, kind: input, shape index: {}]
  %s2 = inlined_call_operand.vmem [shape: f32[18,4], index: 2, kind: input, shape index: {}]
  %s3 = inlined_call_operand.vmem [shape: f32[4,1], index: 3, kind: input, shape index: {}]
  %s4 = inlined_call_operand.vmem [shape: f32[4,1], index: 4, kind: input, shape index: {}]
  %s5 = inlined_call_operand.vmem [shape: f32[2,256], index: 5, kind: input, shape index: {}]
  %s6 = inlined_call_operand.hbm [shape: f32[2,4,256], index: 6, kind: output, shape index: {}]
  %s7 = sld [smem:[#allocation0]]
  $region57: #{tpu_custom_call.1} parent=0
    _
  %s9 = ssub.s32 1, %s7
  %s10 = scalar_select 0, %s9, %s7
  $region1: #{tpu_custom_call.1} parent=0
    #allocation3 [shape = 'u8[8192]{0}', space=vmem, size = 0x2000, scoped, tag = 'output window, operand 0']
    #allocation4 [shape = 's32[2]{0}', space=sflag, size = 0x8, scoped, tag = 'scoped memory for tpu_custom_call.1']
    %11 = vsyncpa [#allocation4], 0
    %s12 = scalar_lea.sflag [#allocation4], 1
    %13 = vsyncpa %s12, 0
    loop: start=0, step=1, limit=4
    $region2: #{tpu_custom_call.1} parent=1 // loop_pre_header
      _
    $region3: #{tpu_custom_call.1} parent=1 // loop_header
      %s15 = sphi 0, %s19
      %p16 = scmp.ge.s32.totalorder %s15, 4
      %s25 = sphi 0, %s27
      %s28 = sphi 0, %s25
      %s29 = sphi 0, %s28
      %s45 = sphi 0, %s29
      %s49 = sphi 0, %s49
      %s51 = sphi 0, %s49
      %s52 = sphi 0, %s51
      %s66 = sphi 0, %s52
      %s70 = sphi 0, %s70
      %s72 = sphi 0, %s70
      %s73 = sphi 0, %s72
      %s87 = sphi 0, %s73
      %s91 = sphi 0, %s91
      %s93 = sphi 0, %s91
      %s94 = sphi 0, %s93
      %s108 = sphi 0, %s94
      %s112 = sphi 0, %s112
      %s114 = sphi 0, %s112
      %s115 = sphi 0, %s114
      %s129 = sphi 0, %s115
      %s133 = sphi 0, %s133
      %s135 = sphi 0, %s133
      %s136 = sphi 0, %s135
      %s150 = sphi 0, %s136
      %s156 = sphi 0, %s158
      %s159 = sphi 0, %s156
      %s160 = sphi 0, %s159
      %s176 = sphi 0, %s160
    $region4: #{tpu_custom_call.1} parent=1 // loop_header_branch
      %18 = sbr.rel (%p16) target = $region8
    $region5: #{tpu_custom_call.1} parent=1 // loop_body
      %s20 = ssub.s32 %s15, 1
      %s21 = ssub.s32 %s15, 2
      %s22 = sadd.s32 %s15, 1
      %s23 = ssub.s32 %s15, %s22
      %p24 = scmp.eq.s32.totalorder %s23, 0
      %s26 = sadd.s32 %s25, 1
      %s27 = scalar_select %p24, %s25, %s26
      %p30 = pneg %p24
      %p31 = scmp.eq.s32.totalorder %s15, 1
      %p32 = por %p30, %p31
      %p33 = scmp.ne.s32.totalorder %s25, %s28
      %p34 = scmp.eq.s32.totalorder %s15, 0
      %p35 = por %p33, %p34
      %p36 = scmp.ne.s32.totalorder %s25, %s28
      %p37 = scmp.eq.s32.totalorder %s20, 1
      %p38 = por %p36, %p37
      %p39 = scmp.ne.s32.totalorder %s28, %s29
      %p40 = scmp.eq.s32.totalorder %s20, 0
      %p41 = por %p39, %p40
      %p42 = scmp.ne.s32.totalorder %s28, %s29
      %p43 = scmp.eq.s32.totalorder %s21, 1
      %p44 = por %p42, %p43
      %p46 = scmp.ne.s32.totalorder %s29, %s45
      %p47 = scmp.eq.s32.totalorder %s21, 0
      %p48 = por %p46, %p47
      %s50 = sadd.s32 %s49, 1
      %p53 = scmp.eq.s32.totalorder %s15, 1
      %p54 = scmp.ne.s32.totalorder %s49, %s51
      %p55 = scmp.eq.s32.totalorder %s15, 0
      %p56 = por %p54, %p55
      %p57 = scmp.ne.s32.totalorder %s49, %s51
      %p58 = scmp.eq.s32.totalorder %s20, 1
      %p59 = por %p57, %p58
      %p60 = scmp.ne.s32.totalorder %s51, %s52
      %p61 = scmp.eq.s32.totalorder %s20, 0
      %p62 = por %p60, %p61
      %p63 = scmp.ne.s32.totalorder %s51, %s52
      %p64 = scmp.eq.s32.totalorder %s21, 1
      %p65 = por %p63, %p64
      %p67 = scmp.ne.s32.totalorder %s52, %s66
      %p68 = scmp.eq.s32.totalorder %s21, 0
      %p69 = por %p67, %p68
      %s71 = sadd.s32 %s70, 1
      %p74 = scmp.eq.s32.totalorder %s15, 1
      %p75 = scmp.ne.s32.totalorder %s70, %s72
      %p76 = scmp.eq.s32.totalorder %s15, 0
      %p77 = por %p75, %p76
      %p78 = scmp.ne.s32.totalorder %s70, %s72
      %p79 = scmp.eq.s32.totalorder %s20, 1
      %p80 = por %p78, %p79
      %p81 = scmp.ne.s32.totalorder %s72, %s73
      %p82 = scmp.eq.s32.totalorder %s20, 0
      %p83 = por %p81, %p82
      %p84 = scmp.ne.s32.totalorder %s72, %s73
      %p85 = scmp.eq.s32.totalorder %s21, 1
      %p86 = por %p84, %p85
      %p88 = scmp.ne.s32.totalorder %s73, %s87
      %p89 = scmp.eq.s32.totalorder %s21, 0
      %p90 = por %p88, %p89
      %s92 = sadd.s32 %s91, 1
      %p95 = scmp.eq.s32.totalorder %s15, 1
      %p96 = scmp.ne.s32.totalorder %s91, %s93
      %p97 = scmp.eq.s32.totalorder %s15, 0
      %p98 = por %p96, %p97
      %p99 = scmp.ne.s32.totalorder %s91, %s93
      %p100 = scmp.eq.s32.totalorder %s20, 1
      %p101 = por %p99, %p100
      %p102 = scmp.ne.s32.totalorder %s93, %s94
      %p103 = scmp.eq.s32.totalorder %s20, 0
      %p104 = por %p102, %p103
      %p105 = scmp.ne.s32.totalorder %s93, %s94
      %p106 = scmp.eq.s32.totalorder %s21, 1
      %p107 = por %p105, %p106
      %p109 = scmp.ne.s32.totalorder %s94, %s108
      %p110 = scmp.eq.s32.totalorder %s21, 0
      %p111 = por %p109, %p110
      %s113 = sadd.s32 %s112, 1
      %p116 = scmp.eq.s32.totalorder %s15, 1
      %p117 = scmp.ne.s32.totalorder %s112, %s114
      %p118 = scmp.eq.s32.totalorder %s15, 0
      %p119 = por %p117, %p118
      %p120 = scmp.ne.s32.totalorder %s112, %s114
      %p121 = scmp.eq.s32.totalorder %s20, 1
      %p122 = por %p120, %p121
      %p123 = scmp.ne.s32.totalorder %s114, %s115
      %p124 = scmp.eq.s32.totalorder %s20, 0
      %p125 = por %p123, %p124
      %p126 = scmp.ne.s32.totalorder %s114, %s115
      %p127 = scmp.eq.s32.totalorder %s21, 1
      %p128 = por %p126, %p127
      %p130 = scmp.ne.s32.totalorder %s115, %s129
      %p131 = scmp.eq.s32.totalorder %s21, 0
      %p132 = por %p130, %p131
      %s134 = sadd.s32 %s133, 1
      %p137 = scmp.eq.s32.totalorder %s15, 1
      %p138 = scmp.ne.s32.totalorder %s133, %s135
      %p139 = scmp.eq.s32.totalorder %s15, 0
      %p140 = por %p138, %p139
      %p141 = scmp.ne.s32.totalorder %s133, %s135
      %p142 = scmp.eq.s32.totalorder %s20, 1
      %p143 = por %p141, %p142
      %p144 = scmp.ne.s32.totalorder %s135, %s136
      %p145 = scmp.eq.s32.totalorder %s20, 0
      %p146 = por %p144, %p145
      %p147 = scmp.ne.s32.totalorder %s135, %s136
      %p148 = scmp.eq.s32.totalorder %s21, 1
      %p149 = por %p147, %p148
      %p151 = scmp.ne.s32.totalorder %s136, %s150
      %p152 = scmp.eq.s32.totalorder %s21, 0
      %p153 = por %p151, %p152
      %s154 = ssub.s32 %s15, %s22
      %p155 = scmp.eq.s32.totalorder %s154, 0
      %s157 = sadd.s32 %s156, 1
      %s158 = scalar_select %p155, %s156, %s157
      %p161 = pneg %p155
      %p162 = scmp.eq.s32.totalorder %s15, 1
      %p163 = por %p161, %p162
      %p164 = scmp.ne.s32.totalorder %s156, %s159
      %p165 = scmp.eq.s32.totalorder %s15, 0
      %p166 = por %p164, %p165
      %p167 = scmp.ne.s32.totalorder %s156, %s159
      %p168 = scmp.eq.s32.totalorder %s20, 1
      %p169 = por %p167, %p168
      %p170 = scmp.ne.s32.totalorder %s159, %s160
      %p171 = scmp.eq.s32.totalorder %s20, 0
      %p172 = por %p170, %p171
      %p173 = scmp.ne.s32.totalorder %s159, %s160
      %p174 = scmp.eq.s32.totalorder %s21, 1
      %p175 = por %p173, %p174
      %p177 = scmp.ne.s32.totalorder %s160, %s176
      %p178 = scmp.eq.s32.totalorder %s21, 0
      %p179 = por %p177, %p178
      %p180 = scmp.le.s32.totalorder 1, %s15
      %p181 = scmp.lt.s32.totalorder %s15, 3
      %p182 = pnand %p180, %p181
      %p183 = pneg %p182
      // Predicated region
      $region9: #{tpu_custom_call.1} parent=5 // pred_check
        _
      $region10: #{tpu_custom_call.1} parent=5 // pred_check_branch
        %185 = sbr.rel (%p182) target = $region12
      $region11: #{tpu_custom_call.1} parent=5 // pred_region
        %s186 = ssub.s32 %s15, 1
        // Predicated region
        $region13: #{tpu_custom_call.1} parent=11 // pred_check
          %p187 = pneg %p62
        $region14: #{tpu_custom_call.1} parent=11 // pred_check_branch
          %189 = sbr.rel (%p187) target = $region16
        $region15: #{tpu_custom_call.1} parent=11 // pred_region
          _
        $region16: #{tpu_custom_call.1} parent=11 // pred_fallthru
          _
        // Predicated region
        $region17: #{tpu_custom_call.1} parent=11 // pred_check
          %p190 = pneg %p83
        $region18: #{tpu_custom_call.1} parent=11 // pred_check_branch
          %192 = sbr.rel (%p190) target = $region20
        $region19: #{tpu_custom_call.1} parent=11 // pred_region
          _
        $region20: #{tpu_custom_call.1} parent=11 // pred_fallthru
          _
        // Predicated region
        $region21: #{tpu_custom_call.1} parent=11 // pred_check
          %p193 = pneg %p104
        $region22: #{tpu_custom_call.1} parent=11 // pred_check_branch
          %195 = sbr.rel (%p193) target = $region24
        $region23: #{tpu_custom_call.1} parent=11 // pred_region
          _
        $region24: #{tpu_custom_call.1} parent=11 // pred_fallthru
          _
        // Predicated region
        $region25: #{tpu_custom_call.1} parent=11 // pred_check
          %p196 = pneg %p125
        $region26: #{tpu_custom_call.1} parent=11 // pred_check_branch
          %198 = sbr.rel (%p196) target = $region28
        $region27: #{tpu_custom_call.1} parent=11 // pred_region
          _
        $region28: #{tpu_custom_call.1} parent=11 // pred_fallthru
          _
        // Predicated region
        $region29: #{tpu_custom_call.1} parent=11 // pred_check
          %p199 = pneg %p146
        $region30: #{tpu_custom_call.1} parent=11 // pred_check_branch
          %201 = sbr.rel (%p199) target = $region32
        $region31: #{tpu_custom_call.1} parent=11 // pred_region
          _
        $region32: #{tpu_custom_call.1} parent=11 // pred_fallthru
          _
      $region12: #{tpu_custom_call.1} parent=5 // pred_fallthru
        _
      %p202 = scmp.lt.s32.totalorder %s15, 2
      // Predicated region
      $region33: #{tpu_custom_call.1} parent=5 // pred_check
        %p203 = pneg %p202
      $region34: #{tpu_custom_call.1} parent=5 // pred_check_branch
        %205 = sbr.rel (%p203) target = $region36
      $region35: #{tpu_custom_call.1} parent=5 // pred_region
        // Predicated region
        $region37: #{tpu_custom_call.1} parent=35 // pred_check
          %p206 = pneg %p35
        $region38: #{tpu_custom_call.1} parent=35 // pred_check_branch
          %208 = sbr.rel (%p206) target = $region40
        $region39: #{tpu_custom_call.1} parent=35 // pred_region
          %p209 = scmp.lt.s32.totalorder %s15, 1
          %s210 = scalar_select %p209, %s15, 1
          %s211 = smul.addr %s210, 2
          %s212 = smul.addr %s211, 4
          %s213 = scalar_lea.vmem %s0, %s212
        $region40: #{tpu_custom_call.1} parent=35 // pred_fallthru
          _
      $region36: #{tpu_custom_call.1} parent=5 // pred_fallthru
        _
      %p214 = scmp.le.s32.totalorder 1, %s15
      %p215 = scmp.lt.s32.totalorder %s15, 3
      %p216 = pnand %p214, %p215
      %p217 = pneg %p216
      // Predicated region
      $region41: #{tpu_custom_call.1} parent=5 // pred_check
        _
      $region42: #{tpu_custom_call.1} parent=5 // pred_check_branch
        %219 = sbr.rel (%p216) target = $region44
      $region43: #{tpu_custom_call.1} parent=5 // pred_region
        %s220 = ssub.s32 %s15, 1
        %p221 = scmp.lt.s32.totalorder %s20, 1
        %s222 = scalar_select %p221, %s20, 1
        %s223 = smul.addr %s222, 2
        %s224 = smul.addr %s223, 4
        %s225 = scalar_lea.vmem %s0, %s224
        %p226 = pneg %p41
        %p227 = pneg %p38
        %p228 = pneg %p62
        %p229 = pneg %p59
        %p230 = pneg %p83
        %p231 = pneg %p80
        %p232 = pneg %p104
        %p233 = pneg %p101
        %p234 = pneg %p125
        %p235 = pneg %p122
        %p236 = pneg %p146
        %p237 = pneg %p143
        %p238 = pneg %p172
        %p239 = pneg %p169
        %s240 = sand.u32 %s159, 1
        %s241 = scalar_lea.sflag [#allocation4], %s240
        %s242 = sand.u32 %s159, 1
        %s243 = smul.addr %s242, 8
        %s244 = scalar_lea.vmem [#allocation3], %s243
        %p245 = scmp.lt.s32.totalorder %s20, 1
        %s246 = scalar_select %p245, %s20, 1
        %s247 = smul.addr %s246, 2
        %s248 = smul.addr %s247, 4
        %s249 = scalar_lea.vmem %s0, %s248
        %v250 = vld [vmem:[%s249] sm:$0xff]
        %vm251 = vcmask 134144
        %252 = vst.msk [vmem:[#allocation2] sm:$0xf] %vm251, 0.0
        %vm253 = vcmask 273544
        %254 = vst.msk [vmem:[#allocation2 + $0x8] sm:$0xf] %vm253, 0.0
        %256 = vrot.lane.b32.xlu0 %v250, 17
        %v257 = vpop.permute.xlu0 %256
        %v258 = vrot.slane %v257, 4
        %vm259 = vcmask 138240
        %v260 = vsel %vm259, %v258, %v257
        %vm263 = vcmask 1043592
        %vm264 = vcmask 1047556
        %vm265 = vmor %vm264, %vm263
        %266 = vst.msk [vmem:[#allocation2] sm:$0xff] %vm265, %v260
        %267 = vst.msk [vmem:[#allocation2 + $0x8] sm:$0xf] %vm251, %v258
        %v268 = vld [vmem:[%s3] sm:$0xf]
        %v269 = vld [vmem:[%s4] sm:$0xf]
        %v270 = vld [vmem:[%s5] sm:$0xf]
        %v271 = vld [vmem:[%s1] sm:$0x3]
        %272 = vst [vmem:[#allocation1] ss:$2 sm:$0xff] %v250
        %v273 = vld.sshfl [vmem:[#allocation1] sm:$0xff pattern:$0x75316420]
        %v274 = vld.sshfl [vmem:[#allocation1 + $0x8] sm:$0xff pattern:$0x75316420]
        %vm275 = vcmask 31744
        %v277 = vsel %vm275, %v271, 0
        %vm279 = vcmask 1043456
        %v280 = vsel %vm279, %v273, 0
        %v282 = vsel %vm279, %v274, 0
        %284 = vmatpush.msra.mxu0 0.0
        %285 = vmatpush.msra.mxu0 0.0
        %286 = vmatpush.msra.mxu0 0.0
        %287 = vmatpush.msra.mxu0 0.0
        %288 = vmatpush.msra.mxu0 0.0
        %289 = vmatpush.msra.mxu0 0.0
        %290 = vmatpush.msra.mxu0 0.0
        %291 = vmatpush.msra.mxu0 0.0
        %292 = vmatpush.msra.mxu0 0.0
        %293 = vmatpush.msra.mxu0 0.0
        %294 = vmatpush.msra.mxu0 0.0
        %295 = vmatpush.msra.mxu0 0.0
        %296 = vmatpush.msra.mxu0 0.0
        %297 = vmatpush.msra.mxu0 0.0
        %298 = vmatpush.msra.mxu0 0.0
        %299 = vmatpush.msra.mxu0 %v280
        %300 = vmatmul.f32.gmra.mxu0 %v277
        %v301 = vpop.f32.mrf.mxu0
        %v302 = vadd.f32 0.0, %v301
        %303 = vdwg.mxu0
        %304 = vmatpush.msra.mxu0 0.0
        %305 = vmatpush.msra.mxu0 0.0
        %306 = vmatpush.msra.mxu0 0.0
        %307 = vmatpush.msra.mxu0 0.0
        %308 = vmatpush.msra.mxu0 0.0
        %309 = vmatpush.msra.mxu0 0.0
        %310 = vmatpush.msra.mxu0 0.0
        %311 = vmatpush.msra.mxu0 0.0
        %312 = vmatpush.msra.mxu0 0.0
        %313 = vmatpush.msra.mxu0 0.0
        %314 = vmatpush.msra.mxu0 0.0
        %315 = vmatpush.msra.mxu0 0.0
        %316 = vmatpush.msra.mxu0 0.0
        %317 = vmatpush.msra.mxu0 0.0
        %318 = vmatpush.msra.mxu0 0.0
        %319 = vmatpush.msra.mxu0 %v282
        %320 = vmatmul.f32.gmra.mxu0 %v277
        %v321 = vpop.f32.mrf.mxu0
        %v322 = vadd.f32 0.0, %v321
        %323 = vdwg.mxu0
        %325 = vset.pattern.permute.xlu0 0
        %326 = vperm.xlu0 %325, %v268
        %v327 = vpop.permute.xlu0 %326
        %v329 = vmul.f32 %v302, %v327
        %v330 = vmul.f32 %v322, %v327
        %332 = vset.pattern.permute.xlu0 0
        %333 = vperm.xlu0 %332, %v269
        %v334 = vpop.permute.xlu0 %333
        %v336 = vadd.f32 %v329, %v334
        %v337 = vadd.f32 %v330, %v334
        %vm338 = vcmp.ge.f32.partialorder %v336, 0.0
        %vm339 = vcmp.ge.f32.partialorder %v337, 0.0
        %v340 = vmul.f32 %v336, 0.1
        %v341 = vmul.f32 %v337, 0.1
        %v342 = vsel %vm338, %v336, %v340
        %v343 = vsel %vm339, %v337, %v341
        %v346 = vrot.slane %v343, 4
        %v347 = vsel %vm279, %v342, %v346
        %v349 = vadd.f32 %v250, %v347
        %350 = vst [vmem:[%s244] sm:$0x33] %v349
        %v351 = vld [vmem:[%s2] sm:$0xff]
        %v352 = vld [vmem:[%s2 + $0x8] sm:$0xff]
        %v353 = vld [vmem:[%s2 + $0x10] sm:$0x3]
        %v354 = vld [vmem:[#allocation2] sm:$0xff]
        %v356 = vperm.slane %v270, 0
        %v357 = vperm.slane %v270, 2
        %v360 = vperm.slane %v356, 0
        %v361 = vperm.slane %v357, 0
        %v364 = vrot.slane %v361, 4
        %v365 = vsel %vm279, %v360, %v364
        %v367 = vmul.f32 %v354, %v365
        %v368 = vld [vmem:[#allocation2 + $0x8] sm:$0xf]
        %v370 = vrot.slane %v351, 2
        %373 = vst [vmem:[#allocation1] ss:$2 sm:$0xff] %v354
        %s374 = scalar_lea.vmem [#allocation1], 16
        %375 = vst [vmem:[%s374] ss:$2 sm:$0xff] %v368
        %v376 = vld.sshfl [vmem:[#allocation1] sm:$0xff pattern:$0x75316420]
        %v377 = vld.sshfl [vmem:[#allocation1 + $0x8] sm:$0xff pattern:$0x75316420]
        %v378 = vld.sshfl [vmem:[#allocation1 + $0x10] sm:$0xff pattern:$0x75316420]
        %379 = vrot.lane.b32.xlu0 %v376, 127
        %v380 = vpop.permute.xlu0 %379
        %381 = vrot.lane.b32.xlu0 %v377, 127
        %v382 = vpop.permute.xlu0 %381
        %383 = vrot.lane.b32.xlu0 %v378, 127
        %v384 = vpop.permute.xlu0 %383
        %vm385 = vcmask 1039360
        %v386 = vsel %vm385, %v380, %v382
        %v387 = vsel %vm385, %v382, %v384
        %v388 = vsel %vm275, %v370, 0
        %v390 = vsel %vm279, %v386, 0
        %v392 = vsel %vm279, %v387, 0
        %394 = vmatpush.msra.mxu0 0.0
        %395 = vmatpush.msra.mxu0 0.0
        %396 = vmatpush.msra.mxu0 0.0
        %397 = vmatpush.msra.mxu0 0.0
        %398 = vmatpush.msra.mxu0 0.0
        %399 = vmatpush.msra.mxu0 0.0
        %400 = vmatpush.msra.mxu0 0.0
        %401 = vmatpush.msra.mxu0 0.0
        %402 = vmatpush.msra.mxu0 0.0
        %403 = vmatpush.msra.mxu0 0.0
        %404 = vmatpush.msra.mxu0 0.0
        %405 = vmatpush.msra.mxu0 0.0
        %406 = vmatpush.msra.mxu0 0.0
        %407 = vmatpush.msra.mxu0 0.0
        %408 = vmatpush.msra.mxu0 0.0
        %409 = vmatpush.msra.mxu0 %v390
        %410 = vmatmul.f32.gmra.mxu0 %v388
        %v411 = vpop.f32.mrf.mxu0
        %v412 = vadd.f32 0.0, %v411
        %413 = vdwg.mxu0
        %414 = vmatpush.msra.mxu0 0.0
        %415 = vmatpush.msra.mxu0 0.0
        %416 = vmatpush.msra.mxu0 0.0
        %417 = vmatpush.msra.mxu0 0.0
        %418 = vmatpush.msra.mxu0 0.0
        %419 = vmatpush.msra.mxu0 0.0
        %420 = vmatpush.msra.mxu0 0.0
        %421 = vmatpush.msra.mxu0 0.0
        %422 = vmatpush.msra.mxu0 0.0
        %423 = vmatpush.msra.mxu0 0.0
        %424 = vmatpush.msra.mxu0 0.0
        %425 = vmatpush.msra.mxu0 0.0
        %426 = vmatpush.msra.mxu0 0.0
        %427 = vmatpush.msra.mxu0 0.0
        %428 = vmatpush.msra.mxu0 0.0
        %429 = vmatpush.msra.mxu0 %v392
        %430 = vmatmul.f32.gmra.mxu0 %v388
        %v431 = vpop.f32.mrf.mxu0
        %v432 = vadd.f32 0.0, %v431
        %433 = vdwg.mxu0
        %435 = vst [vmem:[#allocation1] ss:$2 sm:$0xff] %v367
        %v436 = vld.sshfl [vmem:[#allocation1] sm:$0xff pattern:$0x75316420]
        %v437 = vld.sshfl [vmem:[#allocation1 + $0x8] sm:$0xff pattern:$0x75316420]
        %v438 = vsel %vm275, %v351, 0
        %v440 = vsel %vm279, %v436, 0
        %v442 = vsel %vm279, %v437, 0
        %444 = vmatpush.msra.mxu0 0.0
        %445 = vmatpush.msra.mxu0 0.0
        %446 = vmatpush.msra.mxu0 0.0
        %447 = vmatpush.msra.mxu0 0.0
        %448 = vmatpush.msra.mxu0 0.0
        %449 = vmatpush.msra.mxu0 0.0
        %450 = vmatpush.msra.mxu0 0.0
        %451 = vmatpush.msra.mxu0 0.0
        %452 = vmatpush.msra.mxu0 0.0
        %453 = vmatpush.msra.mxu0 0.0
        %454 = vmatpush.msra.mxu0 0.0
        %455 = vmatpush.msra.mxu0 0.0
        %456 = vmatpush.msra.mxu0 0.0
        %457 = vmatpush.msra.mxu0 0.0
        %458 = vmatpush.msra.mxu0 0.0
        %459 = vmatpush.msra.mxu0 %v440
        %460 = vmatmul.f32.gmra.mxu0 %v438
        %v461 = vpop.f32.mrf.mxu0
        %v462 = vadd.f32 %v412, %v461
        %463 = vdwg.mxu0
        %464 = vmatpush.msra.mxu0 0.0
        %465 = vmatpush.msra.mxu0 0.0
        %466 = vmatpush.msra.mxu0 0.0
        %467 = vmatpush.msra.mxu0 0.0
        %468 = vmatpush.msra.mxu0 0.0
        %469 = vmatpush.msra.mxu0 0.0
        %470 = vmatpush.msra.mxu0 0.0
        %471 = vmatpush.msra.mxu0 0.0
        %472 = vmatpush.msra.mxu0 0.0
        %473 = vmatpush.msra.mxu0 0.0
        %474 = vmatpush.msra.mxu0 0.0
        %475 = vmatpush.msra.mxu0 0.0
        %476 = vmatpush.msra.mxu0 0.0
        %477 = vmatpush.msra.mxu0 0.0
        %478 = vmatpush.msra.mxu0 0.0
        %479 = vmatpush.msra.mxu0 %v442
        %480 = vmatmul.f32.gmra.mxu0 %v438
        %v481 = vpop.f32.mrf.mxu0
        %v482 = vadd.f32 %v432, %v481
        %483 = vdwg.mxu0
        %v484 = vld [vmem:[#allocation2] sm:$0xff]
        %v485 = vld [vmem:[#allocation2 + $0x8] sm:$0xf]
        %v486 = vperm.slane %v270, 1
        %v487 = vperm.slane %v270, 3
        %v490 = vperm.slane %v486, 1
        %v491 = vperm.slane %v487, 1
        %v494 = vrot.slane %v491, 4
        %v495 = vsel %vm279, %v490, %v494
        %496 = vrot.lane.b32.xlu0 %v495, 2
        %v497 = vpop.permute.xlu0 %496
        %v498 = vrot.slane %v497, 4
        %vm499 = vcmask 15360
        %v500 = vsel %vm499, %v498, %v497
        %v503 = vmul.f32 %v484, %v500
        %v504 = vmul.f32 %v485, %v498
        %v505 = vrot.slane %v351, 4
        %508 = vst [vmem:[#allocation1] ss:$2 sm:$0xff] %v503
        %s509 = scalar_lea.vmem [#allocation1], 16
        %510 = vst [vmem:[%s509] ss:$2 sm:$0xff] %v504
        %v511 = vld.sshfl [vmem:[#allocation1] sm:$0xff pattern:$0x75316420]
        %v512 = vld.sshfl [vmem:[#allocation1 + $0x8] sm:$0xff pattern:$0x75316420]
        %v513 = vld.sshfl [vmem:[#allocation1 + $0x10] sm:$0xff pattern:$0x75316420]
        %514 = vrot.lane.b32.xlu0 %v511, 126
        %v515 = vpop.permute.xlu0 %514
        %516 = vrot.lane.b32.xlu0 %v512, 126
        %v517 = vpop.permute.xlu0 %516
        %518 = vrot.lane.b32.xlu0 %v513, 126
        %v519 = vpop.permute.xlu0 %518
        %vm520 = vcmask 1031168
        %v521 = vsel %vm520, %v515, %v517
        %v522 = vsel %vm520, %v517, %v519
        %v523 = vsel %vm275, %v505, 0
        %v525 = vsel %vm279, %v521, 0
        %v527 = vsel %vm279, %v522, 0
        %529 = vmatpush.msra.mxu0 0.0
        %530 = vmatpush.msra.mxu0 0.0
        %531 = vmatpush.msra.mxu0 0.0
        %532 = vmatpush.msra.mxu0 0.0
        %533 = vmatpush.msra.mxu0 0.0
        %534 = vmatpush.msra.mxu0 0.0
        %535 = vmatpush.msra.mxu0 0.0
        %536 = vmatpush.msra.mxu0 0.0
        %537 = vmatpush.msra.mxu0 0.0
        %538 = vmatpush.msra.mxu0 0.0
        %539 = vmatpush.msra.mxu0 0.0
        %540 = vmatpush.msra.mxu0 0.0
        %541 = vmatpush.msra.mxu0 0.0
        %542 = vmatpush.msra.mxu0 0.0
        %543 = vmatpush.msra.mxu0 0.0
        %544 = vmatpush.msra.mxu0 %v525
        %545 = vmatmul.f32.gmra.mxu0 %v523
        %v546 = vpop.f32.mrf.mxu0
        %v547 = vadd.f32 0.0, %v546
        %548 = vdwg.mxu0
        %549 = vmatpush.msra.mxu0 0.0
        %550 = vmatpush.msra.mxu0 0.0
        %551 = vmatpush.msra.mxu0 0.0
        %552 = vmatpush.msra.mxu0 0.0
        %553 = vmatpush.msra.mxu0 0.0
        %554 = vmatpush.msra.mxu0 0.0
        %555 = vmatpush.msra.mxu0 0.0
        %556 = vmatpush.msra.mxu0 0.0
        %557 = vmatpush.msra.mxu0 0.0
        %558 = vmatpush.msra.mxu0 0.0
        %559 = vmatpush.msra.mxu0 0.0
        %560 = vmatpush.msra.mxu0 0.0
        %561 = vmatpush.msra.mxu0 0.0
        %562 = vmatpush.msra.mxu0 0.0
        %563 = vmatpush.msra.mxu0 0.0
        %564 = vmatpush.msra.mxu0 %v527
        %565 = vmatmul.f32.gmra.mxu0 %v523
        %v566 = vpop.f32.mrf.mxu0
        %v567 = vadd.f32 0.0, %v566
        %568 = vdwg.mxu0
        %v569 = vadd.f32 %v462, %v547
        %v570 = vadd.f32 %v482, %v567
        %v571 = vld [vmem:[#allocation2] sm:$0xff]
        %v572 = vld [vmem:[#allocation2 + $0x8] sm:$0xf]
        %573 = vrot.lane.b32.xlu0 %v365, 16
        %v574 = vpop.permute.xlu0 %573
        %v575 = vrot.slane %v574, 4
        %vm576 = vcmask 130048
        %v577 = vsel %vm576, %v575, %v574
        %v580 = vmul.f32 %v571, %v577
        %v581 = vmul.f32 %v572, %v575
        %v582 = vrot.slane %v351, 6
        %585 = vst [vmem:[#allocation1] ss:$2 sm:$0xff] %v580
        %s586 = scalar_lea.vmem [#allocation1], 16
        %587 = vst [vmem:[%s586] ss:$2 sm:$0xff] %v581
        %v588 = vld.sshfl [vmem:[#allocation1] sm:$0xff pattern:$0x75316420]
        %v589 = vld.sshfl [vmem:[#allocation1 + $0x8] sm:$0xff pattern:$0x75316420]
        %v590 = vld.sshfl [vmem:[#allocation1 + $0x10] sm:$0xff pattern:$0x75316420]
        %591 = vrot.lane.b32.xlu0 %v588, 112
        %v592 = vpop.permute.xlu0 %591
        %593 = vrot.lane.b32.xlu0 %v589, 112
        %v594 = vpop.permute.xlu0 %593
        %595 = vrot.lane.b32.xlu0 %v590, 112
        %v596 = vpop.permute.xlu0 %595
        %vm597 = vcmask 916480
        %v598 = vsel %vm597, %v592, %v594
        %v599 = vsel %vm597, %v594, %v596
        %v600 = vsel %vm275, %v582, 0
        %v602 = vsel %vm279, %v598, 0
        %v604 = vsel %vm279, %v599, 0
        %606 = vmatpush.msra.mxu0 0.0
        %607 = vmatpush.msra.mxu0 0.0
        %608 = vmatpush.msra.mxu0 0.0
        %609 = vmatpush.msra.mxu0 0.0
        %610 = vmatpush.msra.mxu0 0.0
        %611 = vmatpush.msra.mxu0 0.0
        %612 = vmatpush.msra.mxu0 0.0
        %613 = vmatpush.msra.mxu0 0.0
        %614 = vmatpush.msra.mxu0 0.0
        %615 = vmatpush.msra.mxu0 0.0
        %616 = vmatpush.msra.mxu0 0.0
        %617 = vmatpush.msra.mxu0 0.0
        %618 = vmatpush.msra.mxu0 0.0
        %619 = vmatpush.msra.mxu0 0.0
        %620 = vmatpush.msra.mxu0 0.0
        %621 = vmatpush.msra.mxu0 %v602
        %622 = vmatmul.f32.gmra.mxu0 %v600
        %v623 = vpop.f32.mrf.mxu0
        %v624 = vadd.f32 0.0, %v623
        %625 = vdwg.mxu0
        %626 = vmatpush.msra.mxu0 0.0
        %627 = vmatpush.msra.mxu0 0.0
        %628 = vmatpush.msra.mxu0 0.0
        %629 = vmatpush.msra.mxu0 0.0
        %630 = vmatpush.msra.mxu0 0.0
        %631 = vmatpush.msra.mxu0 0.0
        %632 = vmatpush.msra.mxu0 0.0
        %633 = vmatpush.msra.mxu0 0.0
        %634 = vmatpush.msra.mxu0 0.0
        %635 = vmatpush.msra.mxu0 0.0
        %636 = vmatpush.msra.mxu0 0.0
        %637 = vmatpush.msra.mxu0 0.0
        %638 = vmatpush.msra.mxu0 0.0
        %639 = vmatpush.msra.mxu0 0.0
        %640 = vmatpush.msra.mxu0 0.0
        %641 = vmatpush.msra.mxu0 %v604
        %642 = vmatmul.f32.gmra.mxu0 %v600
        %v643 = vpop.f32.mrf.mxu0
        %v644 = vadd.f32 0.0, %v643
        %645 = vdwg.mxu0
        %v646 = vadd.f32 %v569, %v624
        %v647 = vadd.f32 %v570, %v644
        %v648 = vld [vmem:[#allocation2] sm:$0xff]
        %v649 = vld [vmem:[#allocation2 + $0x8] sm:$0xf]
        %652 = vst [vmem:[#allocation1] ss:$2 sm:$0xff] %v648
        %s653 = scalar_lea.vmem [#allocation1], 16
        %654 = vst [vmem:[%s653] ss:$2 sm:$0xff] %v649
        %v655 = vld.sshfl [vmem:[#allocation1] sm:$0xff pattern:$0x75316420]
        %v656 = vld.sshfl [vmem:[#allocation1 + $0x8] sm:$0xff pattern:$0x75316420]
        %v657 = vld.sshfl [vmem:[#allocation1 + $0x10] sm:$0xff pattern:$0x75316420]
        %658 = vrot.lane.b32.xlu0 %v655, 111
        %v659 = vpop.permute.xlu0 %658
        %660 = vrot.lane.b32.xlu0 %v656, 111
        %v661 = vpop.permute.xlu0 %660
        %662 = vrot.lane.b32.xlu0 %v657, 111
        %v663 = vpop.permute.xlu0 %662
        %vm664 = vcmask 908288
        %v665 = vsel %vm664, %v659, %v661
        %v666 = vsel %vm664, %v661, %v663
        %v668 = vsel %vm275, %v352, 0
        %v670 = vsel %vm279, %v665, 0
        %v672 = vsel %vm279, %v666, 0
        %674 = vmatpush.msra.mxu0 0.0
        %675 = vmatpush.msra.mxu0 0.0
        %676 = vmatpush.msra.mxu0 0.0
        %677 = vmatpush.msra.mxu0 0.0
        %678 = vmatpush.msra.mxu0 0.0
        %679 = vmatpush.msra.mxu0 0.0
        %680 = vmatpush.msra.mxu0 0.0
        %681 = vmatpush.msra.mxu0 0.0
        %682 = vmatpush.msra.mxu0 0.0
        %683 = vmatpush.msra.mxu0 0.0
        %684 = vmatpush.msra.mxu0 0.0
        %685 = vmatpush.msra.mxu0 0.0
        %686 = vmatpush.msra.mxu0 0.0
        %687 = vmatpush.msra.mxu0 0.0
        %688 = vmatpush.msra.mxu0 0.0
        %689 = vmatpush.msra.mxu0 %v670
        %690 = vmatmul.f32.gmra.mxu0 %v668
        %v691 = vpop.f32.mrf.mxu0
        %v692 = vadd.f32 0.0, %v691
        %693 = vdwg.mxu0
        %694 = vmatpush.msra.mxu0 0.0
        %695 = vmatpush.msra.mxu0 0.0
        %696 = vmatpush.msra.mxu0 0.0
        %697 = vmatpush.msra.mxu0 0.0
        %698 = vmatpush.msra.mxu0 0.0
        %699 = vmatpush.msra.mxu0 0.0
        %700 = vmatpush.msra.mxu0 0.0
        %701 = vmatpush.msra.mxu0 0.0
        %702 = vmatpush.msra.mxu0 0.0
        %703 = vmatpush.msra.mxu0 0.0
        %704 = vmatpush.msra.mxu0 0.0
        %705 = vmatpush.msra.mxu0 0.0
        %706 = vmatpush.msra.mxu0 0.0
        %707 = vmatpush.msra.mxu0 0.0
        %708 = vmatpush.msra.mxu0 0.0
        %709 = vmatpush.msra.mxu0 %v672
        %710 = vmatmul.f32.gmra.mxu0 %v668
        %v711 = vpop.f32.mrf.mxu0
        %v712 = vadd.f32 0.0, %v711
        %713 = vdwg.mxu0
        %v714 = vadd.f32 %v646, %v692
        %v715 = vadd.f32 %v647, %v712
        %v716 = vld [vmem:[#allocation2] sm:$0xff]
        %v717 = vld [vmem:[#allocation2 + $0x8] sm:$0xf]
        %718 = vrot.lane.b32.xlu0 %v495, 18
        %v719 = vpop.permute.xlu0 %718
        %v720 = vrot.slane %v719, 4
        %vm721 = vcmask 146432
        %v722 = vsel %vm721, %v720, %v719
        %v725 = vmul.f32 %v716, %v722
        %v726 = vmul.f32 %v717, %v720
        %v727 = vrot.slane %v352, 2
        %730 = vst [vmem:[#allocation1] ss:$2 sm:$0xff] %v725
        %s731 = scalar_lea.vmem [#allocation1], 16
        %732 = vst [vmem:[%s731] ss:$2 sm:$0xff] %v726
        %v733 = vld.sshfl [vmem:[#allocation1] sm:$0xff pattern:$0x75316420]
        %v734 = vld.sshfl [vmem:[#allocation1 + $0x8] sm:$0xff pattern:$0x75316420]
        %v735 = vld.sshfl [vmem:[#allocation1 + $0x10] sm:$0xff pattern:$0x75316420]
        %736 = vrot.lane.b32.xlu0 %v733, 110
        %v737 = vpop.permute.xlu0 %736
        %738 = vrot.lane.b32.xlu0 %v734, 110
        %v739 = vpop.permute.xlu0 %738
        %740 = vrot.lane.b32.xlu0 %v735, 110
        %v741 = vpop.permute.xlu0 %740
        %vm742 = vcmask 900096
        %v743 = vsel %vm742, %v737, %v739
        %v744 = vsel %vm742, %v739, %v741
        %v745 = vsel %vm275, %v727, 0
        %v747 = vsel %vm279, %v743, 0
        %v749 = vsel %vm279, %v744, 0
        %751 = vmatpush.msra.mxu0 0.0
        %752 = vmatpush.msra.mxu0 0.0
        %753 = vmatpush.msra.mxu0 0.0
        %754 = vmatpush.msra.mxu0 0.0
        %755 = vmatpush.msra.mxu0 0.0
        %756 = vmatpush.msra.mxu0 0.0
        %757 = vmatpush.msra.mxu0 0.0
        %758 = vmatpush.msra.mxu0 0.0
        %759 = vmatpush.msra.mxu0 0.0
        %760 = vmatpush.msra.mxu0 0.0
        %761 = vmatpush.msra.mxu0 0.0
        %762 = vmatpush.msra.mxu0 0.0
        %763 = vmatpush.msra.mxu0 0.0
        %764 = vmatpush.msra.mxu0 0.0
        %765 = vmatpush.msra.mxu0 0.0
        %766 = vmatpush.msra.mxu0 %v747
        %767 = vmatmul.f32.gmra.mxu0 %v745
        %v768 = vpop.f32.mrf.mxu0
        %v769 = vadd.f32 0.0, %v768
        %770 = vdwg.mxu0
        %771 = vmatpush.msra.mxu0 0.0
        %772 = vmatpush.msra.mxu0 0.0
        %773 = vmatpush.msra.mxu0 0.0
        %774 = vmatpush.msra.mxu0 0.0
        %775 = vmatpush.msra.mxu0 0.0
        %776 = vmatpush.msra.mxu0 0.0
        %777 = vmatpush.msra.mxu0 0.0
        %778 = vmatpush.msra.mxu0 0.0
        %779 = vmatpush.msra.mxu0 0.0
        %780 = vmatpush.msra.mxu0 0.0
        %781 = vmatpush.msra.mxu0 0.0
        %782 = vmatpush.msra.mxu0 0.0
        %783 = vmatpush.msra.mxu0 0.0
        %784 = vmatpush.msra.mxu0 0.0
        %785 = vmatpush.msra.mxu0 0.0
        %786 = vmatpush.msra.mxu0 %v749
        %787 = vmatmul.f32.gmra.mxu0 %v745
        %v788 = vpop.f32.mrf.mxu0
        %v789 = vadd.f32 0.0, %v788
        %790 = vdwg.mxu0
        %v791 = vadd.f32 %v714, %v769
        %v792 = vadd.f32 %v715, %v789
        %v793 = vld [vmem:[#allocation2] sm:$0xff]
        %v794 = vld [vmem:[#allocation2 + $0x8] sm:$0xf]
        %795 = vrot.lane.b32.xlu0 %v365, 32
        %v796 = vpop.permute.xlu0 %795
        %v797 = vrot.slane %v796, 4
        %vm798 = vcmask 261120
        %v799 = vsel %vm798, %v797, %v796
        %v802 = vmul.f32 %v793, %v799
        %v803 = vmul.f32 %v794, %v797
        %v804 = vrot.slane %v352, 4
        %807 = vst [vmem:[#allocation1] ss:$2 sm:$0xff] %v802
        %s808 = scalar_lea.vmem [#allocation1], 16
        %809 = vst [vmem:[%s808] ss:$2 sm:$0xff] %v803
        %v810 = vld.sshfl [vmem:[#allocation1] sm:$0xff pattern:$0x75316420]
        %v811 = vld.sshfl [vmem:[#allocation1 + $0x8] sm:$0xff pattern:$0x75316420]
        %v812 = vld.sshfl [vmem:[#allocation1 + $0x10] sm:$0xff pattern:$0x75316420]
        %813 = vrot.lane.b32.xlu0 %v810, 96
        %v814 = vpop.permute.xlu0 %813
        %815 = vrot.lane.b32.xlu0 %v811, 96
        %v816 = vpop.permute.xlu0 %815
        %817 = vrot.lane.b32.xlu0 %v812, 96
        %v818 = vpop.permute.xlu0 %817
        %vm819 = vcmask 785408
        %v820 = vsel %vm819, %v814, %v816
        %v821 = vsel %vm819, %v816, %v818
        %v822 = vsel %vm275, %v804, 0
        %v824 = vsel %vm279, %v820, 0
        %v826 = vsel %vm279, %v821, 0
        %828 = vmatpush.msra.mxu0 0.0
        %829 = vmatpush.msra.mxu0 0.0
        %830 = vmatpush.msra.mxu0 0.0
        %831 = vmatpush.msra.mxu0 0.0
        %832 = vmatpush.msra.mxu0 0.0
        %833 = vmatpush.msra.mxu0 0.0
        %834 = vmatpush.msra.mxu0 0.0
        %835 = vmatpush.msra.mxu0 0.0
        %836 = vmatpush.msra.mxu0 0.0
        %837 = vmatpush.msra.mxu0 0.0
        %838 = vmatpush.msra.mxu0 0.0
        %839 = vmatpush.msra.mxu0 0.0
        %840 = vmatpush.msra.mxu0 0.0
        %841 = vmatpush.msra.mxu0 0.0
        %842 = vmatpush.msra.mxu0 0.0
        %843 = vmatpush.msra.mxu0 %v824
        %844 = vmatmul.f32.gmra.mxu0 %v822
        %v845 = vpop.f32.mrf.mxu0
        %v846 = vadd.f32 0.0, %v845
        %847 = vdwg.mxu0
        %848 = vmatpush.msra.mxu0 0.0
        %849 = vmatpush.msra.mxu0 0.0
        %850 = vmatpush.msra.mxu0 0.0
        %851 = vmatpush.msra.mxu0 0.0
        %852 = vmatpush.msra.mxu0 0.0
        %853 = vmatpush.msra.mxu0 0.0
        %854 = vmatpush.msra.mxu0 0.0
        %855 = vmatpush.msra.mxu0 0.0
        %856 = vmatpush.msra.mxu0 0.0
        %857 = vmatpush.msra.mxu0 0.0
        %858 = vmatpush.msra.mxu0 0.0
        %859 = vmatpush.msra.mxu0 0.0
        %860 = vmatpush.msra.mxu0 0.0
        %861 = vmatpush.msra.mxu0 0.0
        %862 = vmatpush.msra.mxu0 0.0
        %863 = vmatpush.msra.mxu0 %v826
        %864 = vmatmul.f32.gmra.mxu0 %v822
        %v865 = vpop.f32.mrf.mxu0
        %v866 = vadd.f32 0.0, %v865
        %867 = vdwg.mxu0
        %v868 = vadd.f32 %v791, %v846
        %v869 = vadd.f32 %v792, %v866
        %v870 = vld [vmem:[#allocation2] sm:$0xff]
        %v871 = vld [vmem:[#allocation2 + $0x8] sm:$0xf]
        %v872 = vrot.slane %v352, 6
        %875 = vst [vmem:[#allocation1] ss:$2 sm:$0xff] %v870
        %s876 = scalar_lea.vmem [#allocation1], 16
        %877 = vst [vmem:[%s876] ss:$2 sm:$0xff] %v871
        %v878 = vld.sshfl [vmem:[#allocation1] sm:$0xff pattern:$0x75316420]
        %v879 = vld.sshfl [vmem:[#allocation1 + $0x8] sm:$0xff pattern:$0x75316420]
        %v880 = vld.sshfl [vmem:[#allocation1 + $0x10] sm:$0xff pattern:$0x75316420]
        %881 = vrot.lane.b32.xlu0 %v878, 95
        %v882 = vpop.permute.xlu0 %881
        %883 = vrot.lane.b32.xlu0 %v879, 95
        %v884 = vpop.permute.xlu0 %883
        %885 = vrot.lane.b32.xlu0 %v880, 95
        %v886 = vpop.permute.xlu0 %885
        %vm887 = vcmask 777216
        %v888 = vsel %vm887, %v882, %v884
        %v889 = vsel %vm887, %v884, %v886
        %v890 = vsel %vm275, %v872, 0
        %v892 = vsel %vm279, %v888, 0
        %v894 = vsel %vm279, %v889, 0
        %896 = vmatpush.msra.mxu0 0.0
        %897 = vmatpush.msra.mxu0 0.0
        %898 = vmatpush.msra.mxu0 0.0
        %899 = vmatpush.msra.mxu0 0.0
        %900 = vmatpush.msra.mxu0 0.0
        %901 = vmatpush.msra.mxu0 0.0
        %902 = vmatpush.msra.mxu0 0.0
        %903 = vmatpush.msra.mxu0 0.0
        %904 = vmatpush.msra.mxu0 0.0
        %905 = vmatpush.msra.mxu0 0.0
        %906 = vmatpush.msra.mxu0 0.0
        %907 = vmatpush.msra.mxu0 0.0
        %908 = vmatpush.msra.mxu0 0.0
        %909 = vmatpush.msra.mxu0 0.0
        %910 = vmatpush.msra.mxu0 0.0
        %911 = vmatpush.msra.mxu0 %v892
        %912 = vmatmul.f32.gmra.mxu0 %v890
        %v913 = vpop.f32.mrf.mxu0
        %v914 = vadd.f32 0.0, %v913
        %915 = vdwg.mxu0
        %916 = vmatpush.msra.mxu0 0.0
        %917 = vmatpush.msra.mxu0 0.0
        %918 = vmatpush.msra.mxu0 0.0
        %919 = vmatpush.msra.mxu0 0.0
        %920 = vmatpush.msra.mxu0 0.0
        %921 = vmatpush.msra.mxu0 0.0
        %922 = vmatpush.msra.mxu0 0.0
        %923 = vmatpush.msra.mxu0 0.0
        %924 = vmatpush.msra.mxu0 0.0
        %925 = vmatpush.msra.mxu0 0.0
        %926 = vmatpush.msra.mxu0 0.0
        %927 = vmatpush.msra.mxu0 0.0
        %928 = vmatpush.msra.mxu0 0.0
        %929 = vmatpush.msra.mxu0 0.0
        %930 = vmatpush.msra.mxu0 0.0
        %931 = vmatpush.msra.mxu0 %v894
        %932 = vmatmul.f32.gmra.mxu0 %v890
        %v933 = vpop.f32.mrf.mxu0
        %v934 = vadd.f32 0.0, %v933
        %935 = vdwg.mxu0
        %v936 = vadd.f32 %v868, %v914
        %v937 = vadd.f32 %v869, %v934
        %v938 = vld [vmem:[#allocation2] sm:$0xff]
        %v939 = vld [vmem:[#allocation2 + $0x8] sm:$0xf]
        %940 = vrot.lane.b32.xlu0 %v495, 34
        %v941 = vpop.permute.xlu0 %940
        %v942 = vrot.slane %v941, 4
        %vm943 = vcmask 277504
        %v944 = vsel %vm943, %v942, %v941
        %v947 = vmul.f32 %v938, %v944
        %v948 = vmul.f32 %v939, %v942
        %951 = vst [vmem:[#allocation1] ss:$2 sm:$0xff] %v947
        %s952 = scalar_lea.vmem [#allocation1], 16
        %953 = vst [vmem:[%s952] ss:$2 sm:$0xff] %v948
        %v954 = vld.sshfl [vmem:[#allocation1] sm:$0xff pattern:$0x75316420]
        %v955 = vld.sshfl [vmem:[#allocation1 + $0x8] sm:$0xff pattern:$0x75316420]
        %v956 = vld.sshfl [vmem:[#allocation1 + $0x10] sm:$0xff pattern:$0x75316420]
        %957 = vrot.lane.b32.xlu0 %v954, 94
        %v958 = vpop.permute.xlu0 %957
        %959 = vrot.lane.b32.xlu0 %v955, 94
        %v960 = vpop.permute.xlu0 %959
        %961 = vrot.lane.b32.xlu0 %v956, 94
        %v962 = vpop.permute.xlu0 %961
        %vm963 = vcmask 769024
        %v964 = vsel %vm963, %v958, %v960
        %v965 = vsel %vm963, %v960, %v962
        %v967 = vsel %vm275, %v353, 0
        %v969 = vsel %vm279, %v964, 0
        %v971 = vsel %vm279, %v965, 0
        %973 = vmatpush.msra.mxu0 0.0
        %974 = vmatpush.msra.mxu0 0.0
        %975 = vmatpush.msra.mxu0 0.0
        %976 = vmatpush.msra.mxu0 0.0
        %977 = vmatpush.msra.mxu0 0.0
        %978 = vmatpush.msra.mxu0 0.0
        %979 = vmatpush.msra.mxu0 0.0
        %980 = vmatpush.msra.mxu0 0.0
        %981 = vmatpush.msra.mxu0 0.0
        %982 = vmatpush.msra.mxu0 0.0
        %983 = vmatpush.msra.mxu0 0.0
        %984 = vmatpush.msra.mxu0 0.0
        %985 = vmatpush.msra.mxu0 0.0
        %986 = vmatpush.msra.mxu0 0.0
        %987 = vmatpush.msra.mxu0 0.0
        %988 = vmatpush.msra.mxu0 %v969
        %989 = vmatmul.f32.gmra.mxu0 %v967
        %v990 = vpop.f32.mrf.mxu0
        %v991 = vadd.f32 0.0, %v990
        %992 = vdwg.mxu0
        %993 = vmatpush.msra.mxu0 0.0
        %994 = vmatpush.msra.mxu0 0.0
        %995 = vmatpush.msra.mxu0 0.0
        %996 = vmatpush.msra.mxu0 0.0
        %997 = vmatpush.msra.mxu0 0.0
        %998 = vmatpush.msra.mxu0 0.0
        %999 = vmatpush.msra.mxu0 0.0
        %1000 = vmatpush.msra.mxu0 0.0
        %1001 = vmatpush.msra.mxu0 0.0
        %1002 = vmatpush.msra.mxu0 0.0
        %1003 = vmatpush.msra.mxu0 0.0
        %1004 = vmatpush.msra.mxu0 0.0
        %1005 = vmatpush.msra.mxu0 0.0
        %1006 = vmatpush.msra.mxu0 0.0
        %1007 = vmatpush.msra.mxu0 0.0
        %1008 = vmatpush.msra.mxu0 %v971
        %1009 = vmatmul.f32.gmra.mxu0 %v967
        %v1010 = vpop.f32.mrf.mxu0
        %v1011 = vadd.f32 0.0, %v1010
        %1012 = vdwg.mxu0
        %v1013 = vadd.f32 %v936, %v991
        %v1014 = vadd.f32 %v937, %v1011
        %v1015 = vrot.slane %v327, 2
        %v1017 = vmul.f32 %v1013, %v1015
        %v1018 = vmul.f32 %v1014, %v1015
        %v1019 = vrot.slane %v334, 2
        %v1021 = vadd.f32 %v1017, %v1019
        %v1022 = vadd.f32 %v1018, %v1019
        %vm1023 = vcmp.ge.f32.partialorder %v1021, 0.0
        %vm1024 = vcmp.ge.f32.partialorder %v1022, 0.0
        %v1025 = vmul.f32 %v1021, 0.1
        %v1026 = vmul.f32 %v1022, 0.1
        %v1027 = vsel %vm1023, %v1021, %v1025
        %v1028 = vsel %vm1024, %v1022, %v1026
        %v1031 = vrot.slane %v1028, 4
        %v1032 = vsel %vm279, %v1027, %v1031
        %v1033 = vrot.slane %v1032, 6
        %v1035 = vadd.f32 %v250, %v1033
        %1036 = vst [vmem:[%s244] sm:$0xcc] %v1035
        %s1037 = sand.u32 %s159, 1
        %s1038 = scalar_lea.sflag [#allocation4], %s1037
        %s1039 = sand.u32 %s159, 1
        %s1040 = smul.addr %s1039, 8
        %s1041 = scalar_lea.vmem [#allocation3], %s1040
        // Predicated region
        $region45: #{tpu_custom_call.1} parent=43 // pred_check
          %p1042 = pneg %p169
        $region46: #{tpu_custom_call.1} parent=43 // pred_check_branch
          %1044 = sbr.rel (%p1042) target = $region48
        $region47: #{tpu_custom_call.1} parent=43 // pred_region
          %1046 = vsyncadd %s1038, 0
          %s1047 = smul.addr %s20, 2
          %s1048 = smul.addr %s1047, 4
          %s1049 = scalar_lea.hbm %s6, %s1048
          %s1051 = sshll.u32 %s1041, 4
          %s1052 = int_to_ptr.vmem [resolvable:$true] %s1051
          %s1053 = sshll.u32 %s1049, 4
          %s1054 = int_to_ptr.hbm [resolvable:$true] %s1053
          %1056 = dma.vmem_to_hbm [thread:$0]  %s1052, 128, %s1054, %s1038
        $region48: #{tpu_custom_call.1} parent=43 // pred_fallthru
          _
      $region44: #{tpu_custom_call.1} parent=5 // pred_fallthru
        _
      %p1057 = scmp.le.s32.totalorder 2, %s15
      // Predicated region
      $region49: #{tpu_custom_call.1} parent=5 // pred_check
        %p1058 = pneg %p1057
      $region50: #{tpu_custom_call.1} parent=5 // pred_check_branch
        %1060 = sbr.rel (%p1058) target = $region52
      $region51: #{tpu_custom_call.1} parent=5 // pred_region
        %s1061 = ssub.s32 %s15, 2
        // Predicated region
        $region53: #{tpu_custom_call.1} parent=51 // pred_check
          %p1062 = pneg %p175
        $region54: #{tpu_custom_call.1} parent=51 // pred_check_branch
          %1064 = sbr.rel (%p1062) target = $region56
        $region55: #{tpu_custom_call.1} parent=51 // pred_region
          %s1065 = sand.u32 %s160, 1
          %s1066 = scalar_lea.sflag [#allocation4], %s1065
          %s1067 = sand.u32 %s160, 1
          %s1068 = smul.addr %s1067, 8
          %s1069 = scalar_lea.vmem [#allocation3], %s1068
          %1071 = dma.done %s1066, 128
        $region56: #{tpu_custom_call.1} parent=51 // pred_fallthru
          _
      $region52: #{tpu_custom_call.1} parent=5 // pred_fallthru
        _
    $region6: #{tpu_custom_call.1} parent=1 // loop_footer
      %s19 = sadd.s32 1, %s15
    $region7: #{tpu_custom_call.1} parent=1 // loop_footer_branch
      %14 = sbr.rel target = $region3
    $region8: #{tpu_custom_call.1} parent=1 // loop_exit
      _
    %1072 = vsyncpa [#allocation4], 1
    %s1073 = scalar_lea.sflag [#allocation4], 1
    %1074 = vsyncpa %s1073, 1

</llo_original>
